<compile_context>
chip_gen: v7x
topology: tpu7x:2x2x1
jax: 0.10.0
libtpu: 0.0.40
codegen_flags: <defaults>
</compile_context>

<pallas_src>
import jax
import jax.numpy as jnp
import numpy as np
from jax import lax
from jax.experimental import pallas as pl
from jax.experimental.pallas import tpu as pltpu

EPS = 1e-9
_LANE = 128


def _round_up(v, m):
    return (v + m - 1) // m * m


def _vmem_budget_bytes():
    """Per-generation VMEM budget: half the physical capacity, capped at 64 MiB.

    v7x (64 MiB physical) -> 32 MiB; v5e/v6e (128 MiB) -> 64 MiB; unknown -> 32 MiB.
    """
    cap = None
    try:
        cap = getattr(pltpu.get_tpu_info(), "vmem_capacity_bytes", None)
    except Exception:
        cap = None
    if not cap:
        cap = 64 * 1024 * 1024
    return int(min(cap // 2, 64 * 1024 * 1024))


def _lanes(v, fold):
    """Replicate a per-feature (F,) vector across fold groups -> (1, fold*F)."""
    return jnp.tile(v, fold).reshape(1, -1)


# --------------------------- fast path: one fused call ---------------------------
def _dice_fused(xf, params, *, n_true, fold, F, vmem_limit):
    """VMEM-resident fused kernel: stats + BN affine + sigmoid + Dice blend."""
    Nf, L = xf.shape
    itemsize = jnp.dtype(xf.dtype).itemsize
    inv_n = float(1.0 / n_true)

    def kernel(x_ref, par_ref, o_ref):
        xt = x_ref[...].astype(jnp.float32)              # (Nf, L), whole array
        s = jnp.sum(xt, axis=0, keepdims=True)           # (1, L)
        sq = jnp.sum(xt * xt, axis=0, keepdims=True)     # (1, L)
        # Per-feature (fold-group) reduction, kept lane-replicated: lanes
        # {l, l+F, l+2F, ...} hold the same feature, so summing rolls by
        # multiples of F along the lane axis gives every lane its group total.
        if fold > 1:
            s_t, sq_t = s, sq
            for k in range(1, fold):
                s_t = s_t + pltpu.roll(s, shift=k * F, axis=1)
                sq_t = sq_t + pltpu.roll(sq, shift=k * F, axis=1)
            s, sq = s_t, sq_t
        mean = s * inv_n
        var = jnp.maximum(sq * inv_n - mean * mean, 0.0)  # clamp: cancellation
        inv_std = lax.rsqrt(var + EPS)
        gamma = par_ref[0:1, :]
        beta = par_ref[1:2, :]
        a = par_ref[2:3, :]
        scale = gamma * inv_std
        shift = beta - mean * scale
        p = jax.nn.sigmoid(xt * scale + shift)
        o_ref[...] = (xt * (a + p * (1.0 - a))).astype(o_ref.dtype)

    return pl.pallas_call(
        kernel,
        out_shape=jax.ShapeDtypeStruct((Nf, L), xf.dtype),
        grid=(1,),
        in_specs=[pl.BlockSpec((Nf, L), lambda i: (0, 0)),
                  pl.BlockSpec((3, L), lambda i: (0, 0))],
        out_specs=pl.BlockSpec((Nf, L), lambda i: (0, 0)),
        compiler_params=pltpu.CompilerParams(
            dimension_semantics=("arbitrary",),
            vmem_limit_bytes=vmem_limit),
        cost_estimate=pl.CostEstimate(
            flops=10 * Nf * L,
            transcendentals=Nf * L,
            bytes_accessed=2 * Nf * L * itemsize + 3 * L * 4),
    )(xf, params)


# ------------------------ streaming path: two pipelined passes -------------------
def _dice_streaming(xf, g, b, a, *, fold, F, n_true, tile_rows, vmem_limit):
    Nf, L = xf.shape
    dtype = xf.dtype
    itemsize = jnp.dtype(dtype).itemsize

    # Tile rows: multiple of 8, capped so ~8 tile-sized f32 buffers fit VMEM.
    cap = max(8, (vmem_limit // (8 * L * 4)) // 8 * 8)
    block_rows = max(8, min((int(tile_rows) // 8) * 8, cap))
    grid_rows = pl.cdiv(Nf, block_rows)
    has_tail = (Nf % block_rows) != 0

    # ---- pass 1: per-tile partial sum / sum-of-squares ("parallel" grid so a
    #      v7x megacore can shard it; tail mask only on the final step) ----
    def stats_kernel(x_ref, part_ref):
        i = pl.program_id(0)

        def _write(xt):
            s = jnp.sum(xt, axis=0, keepdims=True)
            sq = jnp.sum(xt * xt, axis=0, keepdims=True)
            part_ref[0] = jnp.concatenate([s, sq], axis=0)   # (2, L)

        if has_tail:
            @pl.when(i < grid_rows - 1)
            def _():
                _write(x_ref[...].astype(jnp.float32))

            @pl.when(i == grid_rows - 1)
            def _():
                xt = x_ref[...].astype(jnp.float32)
                rows = lax.broadcasted_iota(jnp.int32, xt.shape, 0) + i * block_rows
                _write(jnp.where(rows < Nf, xt, 0.0))
        else:
            _write(x_ref[...].astype(jnp.float32))

    partials = pl.pallas_call(
        stats_kernel,
        out_shape=jax.ShapeDtypeStruct((grid_rows, 2, L), jnp.float32),
        grid=(grid_rows,),
        in_specs=[pl.BlockSpec((block_rows, L), lambda i: (i, 0))],
        out_specs=pl.BlockSpec((1, 2, L), lambda i: (i, 0, 0)),
        compiler_params=pltpu.CompilerParams(
            dimension_semantics=("parallel",),
            vmem_limit_bytes=vmem_limit),
        cost_estimate=pl.CostEstimate(
            flops=3 * Nf * L, transcendentals=0,
            bytes_accessed=Nf * L * itemsize + grid_rows * 2 * L * 4),
    )(xf)

    # ---- tiny glue: combine partials, fold BN affine into scale/shift ----
    sums = jnp.sum(partials, axis=0)                     # (2, L)
    s = sums[0].reshape(fold, F).sum(axis=0)
    sq = sums[1].reshape(fold, F).sum(axis=0)
    inv_n = np.float32(1.0 / n_true)
    mean = s * inv_n
    var = jnp.maximum(sq * inv_n - mean * mean, 0.0)     # clamp: cancellation
    inv_std = lax.rsqrt(var + EPS)
    scale = g * inv_std
    shift = b - mean * scale
    params = jnp.concatenate(
        [_lanes(scale, fold), _lanes(shift, fold),
         _lanes(a, fold), _lanes(1.0 - a, fold)], axis=0)  # (4, L), resident

    # ---- pass 2: apply sigmoid(scale*x + shift) and the Dice blend ----
    def apply_kernel(x_ref, par_ref, o_ref):
        xt = x_ref[...].astype(jnp.float32)
        p = jax.nn.sigmoid(xt * par_ref[0:1, :] + par_ref[1:2, :])
        o_ref[...] = (xt * (par_ref[2:3, :] + p * par_ref[3:4, :])).astype(o_ref.dtype)

    out = pl.pallas_call(
        apply_kernel,
        out_shape=jax.ShapeDtypeStruct((Nf, L), dtype),
        grid=(grid_rows,),
        in_specs=[pl.BlockSpec((block_rows, L), lambda i: (i, 0)),
                  pl.BlockSpec((4, L), lambda i: (0, 0))],
        out_specs=pl.BlockSpec((block_rows, L), lambda i: (i, 0)),
        compiler_params=pltpu.CompilerParams(
            dimension_semantics=("parallel",),
            vmem_limit_bytes=vmem_limit),
        cost_estimate=pl.CostEstimate(
            flops=5 * Nf * L, transcendentals=Nf * L,
            bytes_accessed=2 * Nf * L * itemsize + 4 * L * 4),
    )(xf, params)
    return out


# ----------------------------------- wrapper -----------------------------------
def dice_forward(x, gamma, beta, alpha, dim=2, *, tile_rows=2048,
                 force_streaming=False):
    """Pallas-backed Dice forward (training-mode BatchNorm1d statistics).

    x: (B, F) for dim=2, (B, T, F) for dim=3 (pre-transpose layout of the
    PyTorch module).  gamma/beta: (F,).  alpha: (F,) or (F, 1).
    """
    assert dim in (2, 3)
    orig_shape = x.shape
    F = x.shape[-1]
    x2 = x.reshape(-1, F)            # BN1d(F): stats over batch(*length) samples
    N = x2.shape[0]
    itemsize = jnp.dtype(x.dtype).itemsize

    # Lane-dense fold: pack `fold` consecutive samples into one 128-lane row.
    # Pad a handful of zero rows if N is not a multiple of fold (stats divide
    # by the true N; zeros contribute nothing; output is sliced back).
    fold = _LANE // F if (F < _LANE and _LANE % F == 0) else 1
    N_pad = _round_up(N, fold)
    if N_pad != N:
        x2 = jnp.pad(x2, ((0, N_pad - N), (0, 0)))
    Nf = N_pad // fold
    L = fold * F
    xf = x2.reshape(Nf, L)           # free row-major reinterpretation

    g = gamma.reshape(-1).astype(jnp.float32)
    b = beta.reshape(-1).astype(jnp.float32)
    a = alpha.reshape(-1).astype(jnp.float32)

    budget = _vmem_budget_bytes()

    # Fast path: whole (folded) array resident in VMEM -> one fused kernel,
    # 2 HBM passes instead of 3 and zero inter-call XLA glue.  Conservative
    # estimate: double-buffered in/out windows + a few f32 temporaries.
    resident_bytes = Nf * L * (4 * itemsize + 3 * 4) + 3 * L * 4
    if (not force_streaming) and resident_bytes <= (budget * 3) // 5:
        params = jnp.concatenate(
            [_lanes(g, fold), _lanes(b, fold), _lanes(a, fold)], axis=0)
        out_f = _dice_fused(xf, params, n_true=N, fold=fold, F=F,
                            vmem_limit=budget)
    else:
        out_f = _dice_streaming(xf, g, b, a, fold=fold, F=F, n_true=N,
                                tile_rows=tile_rows, vmem_limit=budget)

    out = out_f.reshape(N_pad, F)
    if N_pad != N:
        out = out[:N]
    return out.reshape(orig_shape)


# ---------------------------------- reference ----------------------------------
def dice_reference(x, gamma, beta, alpha, dim=2):
    """Pure numpy reference mirroring the PyTorch module (training-mode BN)."""
    x = np.asarray(x, dtype=np.float32)
    if dim == 3:
        B, T, F = x.shape
        x2 = x.reshape(B * T, F)
    else:
        x2 = x
    mean = x2.mean(axis=0, keepdims=True)
    var = ((x2 - mean) ** 2).mean(axis=0, keepdims=True)
    x_hat = (x2 - mean) / np.sqrt(var + EPS)
    bn = np.asarray(gamma).reshape(1, -1) * x_hat + np.asarray(beta).reshape(1, -1)
    p = 1.0 / (1.0 + np.exp(-bn))
    a = np.asarray(alpha).reshape(1, -1)
    out = a * (1.0 - p) * x2 + p * x2
    return out.reshape(x.shape)


if __name__ == "__main__":
    key = jax.random.PRNGKey(0)
    k_x2, k_x3, k_x4, k_x5, k_x6, k_g, k_b, k_a = jax.random.split(key, 8)

    num_features = 32

    gamma = 1.0 + 0.1 * jax.random.normal(k_g, (num_features,), jnp.float32)
    beta = 0.1 * jax.random.normal(k_b, (num_features,), jnp.float32)
    alpha = 0.2 * jax.random.normal(k_a, (num_features,), jnp.float32)
    alpha3 = alpha.reshape(num_features, 1)

    # 1) dim=2 (fast fused path): x is (batch, num_features)
    x2 = jax.random.normal(k_x2, (8, num_features), jnp.float32)
    out2 = dice_forward(x2, gamma, beta, alpha, dim=2)
    jax.block_until_ready(out2)
    ref2 = dice_reference(np.asarray(x2), np.asarray(gamma), np.asarray(beta),
                          np.asarray(alpha), dim=2)
    np.testing.assert_allclose(np.asarray(out2), ref2, rtol=1e-5, atol=1e-5)

    # 2) dim=3 (fast fused path): x is (batch, seq, num_features), alpha (F, 1)
    x3 = jax.random.normal(k_x3, (2, 8, num_features), jnp.float32)
    out3 = dice_forward(x3, gamma, beta, alpha3, dim=3)
    jax.block_until_ready(out3)
    ref3 = dice_reference(np.asarray(x3), np.asarray(gamma), np.asarray(beta),
                          np.asarray(alpha), dim=3)
    np.testing.assert_allclose(np.asarray(out3), ref3, rtol=1e-5, atol=1e-5)

    # 3) streaming path, multi-tile + ragged tail (forced small tiles)
    x4 = jax.random.normal(k_x4, (2, 50, num_features), jnp.float32)
    out4 = dice_forward(x4, gamma, beta, alpha3, dim=3, tile_rows=8,
                        force_streaming=True)
    jax.block_until_ready(out4)
    ref4 = dice_reference(np.asarray(x4), np.asarray(gamma), np.asarray(beta),
                          np.asarray(alpha), dim=3)
    np.testing.assert_allclose(np.asarray(out4), ref4, rtol=1e-5, atol=1e-5)

    # 4) streaming path, tail-free (Nf multiple of block_rows)
    x6 = jax.random.normal(k_x6, (4, 64, num_features), jnp.float32)
    out6 = dice_forward(x6, gamma, beta, alpha3, dim=3, tile_rows=8,
                        force_streaming=True)
    jax.block_until_ready(out6)
    ref6 = dice_reference(np.asarray(x6), np.asarray(gamma), np.asarray(beta),
                          np.asarray(alpha), dim=3)
    np.testing.assert_allclose(np.asarray(out6), ref6, rtol=1e-5, atol=1e-5)

    # 5) fold-padding coverage: N not a multiple of fold (fast path, padded rows)
    x5 = jax.random.normal(k_x5, (3, 17, num_features), jnp.float32)   # N = 51
    out5 = dice_forward(x5, gamma, beta, alpha3, dim=3)
    jax.block_until_ready(out5)
    ref5 = dice_reference(np.asarray(x5), np.asarray(gamma), np.asarray(beta),
                          np.asarray(alpha), dim=3)
    np.testing.assert_allclose(np.asarray(out5), ref5, rtol=1e-5, atol=1e-5)

    print("KERNEL_OK")
</pallas_src>

<mosaic_0001>
module attributes {stable_mosaic.version = 11 : i64} {
  func.func @kernel(%arg0: i32, %arg1: memref<2x128xf32, #tpu.memory_space<vmem>>, %arg2: memref<3x128xf32, #tpu.memory_space<vmem>>, %arg3: memref<2x128xf32, #tpu.memory_space<vmem>>) attributes {dimension_semantics = [#tpu.dimension_semantics<arbitrary>], iteration_bounds = array<i64: 1>, scalar_prefetch = 0 : i64, scratch_operands = 0 : i64, tpu.core_type = #tpu.core_type<tc>, window_params = [{pipeline_mode = #tpu.pipeline_mode<synchronous>, transform_indices = @transform_0, window_bounds = array<i64: 2, 128>}, {pipeline_mode = #tpu.pipeline_mode<synchronous>, transform_indices = @transform_1, window_bounds = array<i64: 3, 128>}, {pipeline_mode = #tpu.pipeline_mode<synchronous>, transform_indices = @transform_2, window_bounds = array<i64: 2, 128>}]} {
    %c0 = arith.constant 0 : index
    %c0_0 = arith.constant 0 : index
    %0 = vector.load %arg1[%c0, %c0_0] : memref<2x128xf32, #tpu.memory_space<vmem>>, vector<2x128xf32>
    %cst = arith.constant dense<0.000000e+00> : vector<128xf32>
    %1 = vector.multi_reduction <add>, %0, %cst [0] : vector<2x128xf32> to vector<128xf32>
    %2 = vector.shape_cast %1 : vector<128xf32> to vector<1x128xf32>
    %3 = arith.mulf %0, %0 : vector<2x128xf32>
    %cst_1 = arith.constant dense<0.000000e+00> : vector<128xf32>
    %4 = vector.multi_reduction <add>, %3, %cst_1 [0] : vector<2x128xf32> to vector<128xf32>
    %5 = vector.shape_cast %4 : vector<128xf32> to vector<1x128xf32>
    %c32_i32 = arith.constant 32 : i32
    %6 = tpu.dynamic_rotate %2 by %c32_i32 dim 1 : vector<1x128xf32>, i32 -> vector<1x128xf32>
    %7 = arith.addf %2, %6 : vector<1x128xf32>
    %c32_i32_2 = arith.constant 32 : i32
    %8 = tpu.dynamic_rotate %5 by %c32_i32_2 dim 1 : vector<1x128xf32>, i32 -> vector<1x128xf32>
    %9 = arith.addf %5, %8 : vector<1x128xf32>
    %c64_i32 = arith.constant 64 : i32
    %10 = tpu.dynamic_rotate %2 by %c64_i32 dim 1 : vector<1x128xf32>, i32 -> vector<1x128xf32>
    %11 = arith.addf %7, %10 : vector<1x128xf32>
    %c64_i32_3 = arith.constant 64 : i32
    %12 = tpu.dynamic_rotate %5 by %c64_i32_3 dim 1 : vector<1x128xf32>, i32 -> vector<1x128xf32>
    %13 = arith.addf %9, %12 : vector<1x128xf32>
    %c96_i32 = arith.constant 96 : i32
    %14 = tpu.dynamic_rotate %2 by %c96_i32 dim 1 : vector<1x128xf32>, i32 -> vector<1x128xf32>
    %15 = arith.addf %11, %14 : vector<1x128xf32>
    %c96_i32_4 = arith.constant 96 : i32
    %16 = tpu.dynamic_rotate %5 by %c96_i32_4 dim 1 : vector<1x128xf32>, i32 -> vector<1x128xf32>
    %17 = arith.addf %13, %16 : vector<1x128xf32>
    %cst_5 = arith.constant 1.250000e-01 : f32
    %18 = vector.broadcast %cst_5 : f32 to vector<1x128xf32>
    %19 = arith.mulf %15, %18 : vector<1x128xf32>
    %cst_6 = arith.constant 1.250000e-01 : f32
    %20 = vector.broadcast %cst_6 : f32 to vector<1x128xf32>
    %21 = arith.mulf %17, %20 : vector<1x128xf32>
    %22 = arith.mulf %19, %19 : vector<1x128xf32>
    %23 = arith.subf %21, %22 : vector<1x128xf32>
    %cst_7 = arith.constant 0.000000e+00 : f32
    %24 = vector.broadcast %cst_7 : f32 to vector<1x128xf32>
    %25 = arith.maximumf %23, %24 : vector<1x128xf32>
    %cst_8 = arith.constant 9.99999971E-10 : f32
    %26 = vector.broadcast %cst_8 : f32 to vector<1x128xf32>
    %27 = arith.addf %25, %26 : vector<1x128xf32>
    %28 = math.rsqrt %27 : vector<1x128xf32>
    %c0_9 = arith.constant 0 : index
    %c0_10 = arith.constant 0 : index
    %29 = vector.load %arg2[%c0_9, %c0_10] : memref<3x128xf32, #tpu.memory_space<vmem>>, vector<1x128xf32>
    %c1 = arith.constant 1 : index
    %c0_11 = arith.constant 0 : index
    %30 = vector.load %arg2[%c1, %c0_11] : memref<3x128xf32, #tpu.memory_space<vmem>>, vector<1x128xf32>
    %c2 = arith.constant 2 : index
    %c0_12 = arith.constant 0 : index
    %31 = vector.load %arg2[%c2, %c0_12] : memref<3x128xf32, #tpu.memory_space<vmem>>, vector<1x128xf32>
    %32 = arith.mulf %29, %28 : vector<1x128xf32>
    %33 = arith.mulf %19, %32 : vector<1x128xf32>
    %34 = arith.subf %30, %33 : vector<1x128xf32>
    %35 = vector.broadcast %32 : vector<1x128xf32> to vector<2x128xf32>
    %36 = arith.mulf %0, %35 : vector<2x128xf32>
    %37 = vector.broadcast %34 : vector<1x128xf32> to vector<2x128xf32>
    %38 = arith.addf %36, %37 : vector<2x128xf32>
    %39 = arith.negf %38 : vector<2x128xf32>
    %40 = math.exp %39 : vector<2x128xf32>
    %cst_13 = arith.constant 1.000000e+00 : f32
    %41 = vector.broadcast %cst_13 : f32 to vector<2x128xf32>
    %42 = arith.addf %41, %40 : vector<2x128xf32>
    %43 = arith.divf %41, %42 : vector<2x128xf32>
    %cst_14 = arith.constant 1.000000e+00 : f32
    %44 = vector.broadcast %cst_14 : f32 to vector<1x128xf32>
    %45 = arith.subf %44, %31 : vector<1x128xf32>
    %46 = vector.broadcast %45 : vector<1x128xf32> to vector<2x128xf32>
    %47 = arith.mulf %43, %46 : vector<2x128xf32>
    %48 = vector.broadcast %31 : vector<1x128xf32> to vector<2x128xf32>
    %49 = arith.addf %48, %47 : vector<2x128xf32>
    %50 = arith.mulf %0, %49 : vector<2x128xf32>
    %c0_15 = arith.constant 0 : index
    %c0_16 = arith.constant 0 : index
    %51 = vector.load %arg3[%c0_15, %c0_16] : memref<2x128xf32, #tpu.memory_space<vmem>>, vector<2x128xf32>
    tpu.vector_store %arg3[%c0_15, %c0_16], %50 {strides = array<i32>} : memref<2x128xf32, #tpu.memory_space<vmem>>, vector<2x128xf32>,
    return
  }
  func.func @transform_0(%arg0: i32) -> (i32, i32) {
    %c0_i32 = arith.constant 0 : i32
    %c0_i32_0 = arith.constant 0 : i32
    %c0_i32_1 = arith.constant 0 : i32
    return %c0_i32, %c0_i32_0 : i32, i32
  }
  func.func @transform_1(%arg0: i32) -> (i32, i32) {
    %c0_i32 = arith.constant 0 : i32
    %c0_i32_0 = arith.constant 0 : i32
    %c0_i32_1 = arith.constant 0 : i32
    return %c0_i32, %c0_i32_0 : i32, i32
  }
  func.func @transform_2(%arg0: i32) -> (i32, i32) {
    %c0_i32 = arith.constant 0 : i32
    %c0_i32_0 = arith.constant 0 : i32
    %c0_i32_1 = arith.constant 0 : i32
    return %c0_i32, %c0_i32_0 : i32, i32
  }
}

</mosaic_0001>

<llo_original>
// kernel: tpu_custom_call.1
$region0: #{tpu_custom_call.1}
  #allocation0 [shape = 'u32[]', space=smem, size = 0x4, offset = 0x4, fixed_abs, tag = 'smem constant byte address 0x4 - core index']
  #allocation1 [shape = 'u32[144,128]{1,0:T(1,128)}', space=vmem, size = 0x12000, scoped, tag = 'internal scratch']
  %s0 = inlined_call_operand.hbm [shape: f32[2,128], index: 0, kind: input, shape index: {}]
  %s1 = inlined_call_operand.hbm [shape: f32[3,128], index: 1, kind: input, shape index: {}]
  %s2 = inlined_call_operand.hbm [shape: f32[2,128], index: 2, kind: output, shape index: {}]
  %s3 = sld [smem:[#allocation0]]
  $region26: #{tpu_custom_call.1} parent=0
    _
  %s5 = ssub.s32 1, %s3
  %s6 = scalar_select 0, %s5, %s3
  $region1: #{tpu_custom_call.1} parent=0
    #allocation2 [shape = 'u8[1024]{0}', space=vmem, size = 0x400, scoped, tag = 'input window, operand 0, single buffered']
    #allocation3 [shape = 's32[1]{0}', space=sflag, size = 0x4, scoped, tag = 'scoped memory for tpu_custom_call.1']
    #allocation4 [shape = 's32[1]{0}', space=sflag, size = 0x4, scoped, tag = 'scoped memory for tpu_custom_call.1']
    #allocation5 [shape = 'u8[2048]{0}', space=vmem, size = 0x800, scoped, tag = 'input window, operand 1, single buffered']
    #allocation6 [shape = 's32[1]{0}', space=sflag, size = 0x4, scoped, tag = 'scoped memory for tpu_custom_call.1']
    #allocation7 [shape = 'u8[1024]{0}', space=vmem, size = 0x400, scoped, tag = 'output window, operand 0, single buffered']
    %7 = vsyncpa [#allocation3], 0
    %8 = vsyncpa [#allocation6], 0
    %9 = vsyncpa [#allocation4], 0
    // Predicated region
    $region2: #{tpu_custom_call.1} parent=1 // pred_check
      _
    $region3: #{tpu_custom_call.1} parent=1 // pred_check_branch
      %11 = sbr.rel (0) target = $region5
    $region4: #{tpu_custom_call.1} parent=1 // pred_region
      %s13 = ssub.s32 32, 32
      %14 = vsyncadd [#allocation3], %s13
      %s16 = sshll.u32 [#allocation2], 4
      %s17 = int_to_ptr.vmem [resolvable:$true] %s16
      %19 = dma.hbm_to_vmem [thread:$0]  %s0, 32, %s17, [#allocation3]
    $region5: #{tpu_custom_call.1} parent=1 // pred_fallthru
      _
    // Predicated region
    $region6: #{tpu_custom_call.1} parent=1 // pred_check
      _
    $region7: #{tpu_custom_call.1} parent=1 // pred_check_branch
      %21 = sbr.rel (0) target = $region9
    $region8: #{tpu_custom_call.1} parent=1 // pred_region
      %s23 = ssub.s32 64, 64
      %24 = vsyncadd [#allocation6], %s23
      %s26 = sshll.u32 [#allocation5], 4
      %s27 = int_to_ptr.vmem [resolvable:$true] %s26
      %29 = dma.hbm_to_vmem [thread:$0]  %s1, 64, %s27, [#allocation6]
    $region9: #{tpu_custom_call.1} parent=1 // pred_fallthru
      _
    // Predicated region
    $region10: #{tpu_custom_call.1} parent=1 // pred_check
      _
    $region11: #{tpu_custom_call.1} parent=1 // pred_check_branch
      %31 = sbr.rel (0) target = $region13
    $region12: #{tpu_custom_call.1} parent=1 // pred_region
      %32 = dma.done [#allocation3], 32
    $region13: #{tpu_custom_call.1} parent=1 // pred_fallthru
      _
    // Predicated region
    $region14: #{tpu_custom_call.1} parent=1 // pred_check
      _
    $region15: #{tpu_custom_call.1} parent=1 // pred_check_branch
      %34 = sbr.rel (0) target = $region17
    $region16: #{tpu_custom_call.1} parent=1 // pred_region
      %35 = dma.done [#allocation6], 64
    $region17: #{tpu_custom_call.1} parent=1 // pred_fallthru
      _
    %v36 = vld [vmem:[#allocation2] sm:$0x3]
    %vm37 = vcmask 1041408
    %v38 = vsel %vm37, %v36, 0.0
    %v39 = vrot.slane %v38, 4
    %v40 = vadd.f32 %v38, %v39
    %v41 = vrot.slane %v40, 2
    %v42 = vadd.f32 %v40, %v41
    %v43 = vrot.slane %v42, 1
    %v44 = vadd.f32 %v42, %v43
    %v45 = vmul.f32 %v36, %v36
    %v46 = vsel %vm37, %v45, 0.0
    %v47 = vrot.slane %v46, 4
    %v48 = vadd.f32 %v46, %v47
    %v49 = vrot.slane %v48, 2
    %v50 = vadd.f32 %v48, %v49
    %v51 = vrot.slane %v50, 1
    %v52 = vadd.f32 %v50, %v51
    %53 = vrot.lane.b32.xlu0 %v44, 32
    %v54 = vpop.permute.xlu0 %53
    %v55 = vadd.f32 %v44, %v54
    %56 = vrot.lane.b32.xlu0 %v52, 32
    %v57 = vpop.permute.xlu0 %56
    %v58 = vadd.f32 %v52, %v57
    %59 = vrot.lane.b32.xlu0 %v44, 64
    %v60 = vpop.permute.xlu0 %59
    %v61 = vadd.f32 %v55, %v60
    %62 = vrot.lane.b32.xlu0 %v52, 64
    %v63 = vpop.permute.xlu0 %62
    %v64 = vadd.f32 %v58, %v63
    %65 = vrot.lane.b32.xlu0 %v44, 96
    %v66 = vpop.permute.xlu0 %65
    %v67 = vadd.f32 %v61, %v66
    %68 = vrot.lane.b32.xlu0 %v52, 96
    %v69 = vpop.permute.xlu0 %68
    %v70 = vadd.f32 %v64, %v69
    %v71 = vmul.f32 %v67, 0.125
    %v72 = vmul.f32 %v70, 0.125
    %v73 = vmul.f32 %v71, %v71
    %v74 = vsub.f32 %v72, %v73
    %v75 = vmax.f32 %v74, 0.0
    %v76 = vadd.f32 %v75, 1e-09
    %v77 = vrsqrt.pop %v76
    %v78 = vld [vmem:[#allocation5] sm:$0x1]
    %v79 = vld [vmem:[#allocation5 + $0x1] sm:$0x1]
    %v80 = vld [vmem:[#allocation5 + $0x2] sm:$0x1]
    %v81 = vmul.f32 %v78, %v77
    %v82 = vmul.f32 %v71, %v81
    %v83 = vsub.f32 %v79, %v82
    %v84 = vlaneseq
    %v85 = vshrl.u32 %v84, 7
    %v86 = vsub.s32 0, %v85
    %v87 = vrot.slane %v81, %v86
    %v88 = vmul.f32 %v36, %v87
    %v89 = vlaneseq
    %v90 = vshrl.u32 %v89, 7
    %v91 = vsub.s32 0, %v90
    %v92 = vrot.slane %v83, %v91
    %v93 = vadd.f32 %v88, %v92
    %v94 = vxor.u32 %v93, 2147483648
    %v95 = vmul.f32 %v94, 1.442695
    %v96 = vpow.pop %v95
    %v97 = vadd.f32 %v96, 1.0
    %v98 = vrcp.pop %v97
    %v99 = vmul.f32 1.0, %v98
    %v100 = vsub.f32 1.0, %v80
    %v101 = vlaneseq
    %v102 = vshrl.u32 %v101, 7
    %v103 = vsub.s32 0, %v102
    %v104 = vrot.slane %v100, %v103
    %v105 = vmul.f32 %v99, %v104
    %v106 = vlaneseq
    %v107 = vshrl.u32 %v106, 7
    %v108 = vsub.s32 0, %v107
    %v109 = vrot.slane %v80, %v108
    %v110 = vadd.f32 %v109, %v105
    %v111 = vmul.f32 %v36, %v110
    %112 = vst [vmem:[#allocation7] sm:$0x3] %v111
    // Predicated region
    $region18: #{tpu_custom_call.1} parent=1 // pred_check
      _
    $region19: #{tpu_custom_call.1} parent=1 // pred_check_branch
      %114 = sbr.rel (0) target = $region21
    $region20: #{tpu_custom_call.1} parent=1 // pred_region
      %s116 = ssub.s32 32, 32
      %117 = vsyncadd [#allocation4], %s116
      %s119 = sshll.u32 [#allocation7], 4
      %s120 = int_to_ptr.vmem [resolvable:$true] %s119
      %122 = dma.vmem_to_hbm [thread:$0]  %s120, 32, %s2, [#allocation4]
    $region21: #{tpu_custom_call.1} parent=1 // pred_fallthru
      _
    // Predicated region
    $region22: #{tpu_custom_call.1} parent=1 // pred_check
      _
    $region23: #{tpu_custom_call.1} parent=1 // pred_check_branch
      %124 = sbr.rel (0) target = $region25
    $region24: #{tpu_custom_call.1} parent=1 // pred_region
      %125 = dma.done [#allocation4], 32
    $region25: #{tpu_custom_call.1} parent=1 // pred_fallthru
      _
    %126 = vsyncpa [#allocation3], 1
    %127 = vsyncpa [#allocation6], 1
    %128 = vsyncpa [#allocation4], 1

</llo_original>
